<compile_context>
chip_gen: v6e
topology: v6e:2x2x1
jax: 0.10.0
libtpu: 0.0.40
codegen_flags: <defaults>
</compile_context>

<pallas_src>
import functools
import math

import jax
import jax.numpy as jnp
from jax.experimental import pallas as pl
from jax.experimental.pallas import tpu as pltpu


def _group_sum_rows(v, group_size, stride):
    """Per-row group sum (broadcast back to all rows) via sublane rolls.

    Sample n = g*M + m (M = stride) belongs to group m = n % M, i.e. rows
    {m, m+M, ..., m+(G-1)*M}.  Rolls run on the XLU (separate slot from the
    VPU / store path) and direction is irrelevant: each group is closed under
    shifts by multiples of M (mod N = G*M).  For power-of-two G a log2(G)
    doubling tree is used instead of the naive (G-1)-roll chain.
    """
    if group_size & (group_size - 1) == 0:          # power of two (incl. 1)
        out = v
        s = stride
        while s < group_size * stride:
            out = out + pltpu.roll(out, shift=s, axis=0)
            s *= 2
        return out
    out = v                                          # fallback: naive chain
    for s in range(1, group_size):
        out = out + pltpu.roll(v, shift=s * stride, axis=0)
    return out


def _tree_sum(parts):
    """Pairwise (log-depth) sum of a Python list of equal-shape arrays."""
    parts = list(parts)
    while len(parts) > 1:
        nxt = [parts[i] + parts[i + 1] for i in range(0, len(parts) - 1, 2)]
        if len(parts) % 2:
            nxt.append(parts[-1])
        parts = nxt
    return parts[0]


def _batch_std_kernel(x_ref, o_ref, acc_ref, std_ref, *, group_size, stride,
                      n_rows, feat, n_stream, tile):
    G, M = group_size, stride
    t = pl.program_id(0)

    @pl.when(t < n_stream)
    def _stream_step():
        # Streaming phase: one lane tile of the flattened feature axis.
        @pl.when(t == 0)
        def _init():
            acc_ref[...] = jnp.zeros_like(acc_ref)

        xk = x_ref[...].astype(jnp.float32)                      # (N, tile)
        inv_g = jnp.float32(1.0 / G)
        mean_g = _group_sum_rows(xk, G, M) * inv_g               # per-group mean, all rows
        centered = xk - mean_g                                   # the in-place-centered x
        o_ref[...] = centered.astype(o_ref.dtype)                # lane-dense store

        sq = centered * centered
        # Variance is identical across the G rows of a group; compute it only on
        # the M representative rows (rows 0..M-1) so the EUP sqrt runs on M rows
        # instead of N (Gx fewer transcendentals).
        if M % 8 == 0:
            # Sublane-tile-aligned row slices: pure VALU adds, no XLU rolls.
            var_sum = _tree_sum([sq[g * M:(g + 1) * M, :] for g in range(G)])
        else:
            var_sum = _group_sum_rows(sq, G, M)[0:M, :]
        std_rep = jnp.sqrt(var_sum * inv_g + 1e-8)               # (M, tile), EUP

        # Fold the tile's lane columns down to a single 128-lane column so the
        # accumulator RMW (and the epilogue cross-lane reduce) are tile/128x
        # smaller than the streamed tile.
        folded = _tree_sum([std_rep[:, j * 128:(j + 1) * 128]
                            for j in range(tile // 128)])        # (M, 128)
        acc_ref[0:M, :] = acc_ref[0:M, :] + folded               # rows >= M stay 0

    @pl.when(t == n_stream)
    def _finalize_step():
        # Rows >= M of the accumulator are zero, so the same group-sum broadcast
        # replicates each group's partial sum from row m to all rows of the group.
        acc_full = _group_sum_rows(acc_ref[...], G, M)           # (N, 128)
        std_full = (jnp.sum(acc_full, axis=1, keepdims=True)
                    * jnp.float32(1.0 / feat))                   # (N, 1) per-sample std
        std_ref[...] = std_full                                  # cache for later tiles
        # Full-tile (unmasked where possible) store; the output DMA clips the
        # write-back to the in-bounds lanes of the std channel.
        o_ref[...] = jnp.broadcast_to(std_full, (n_rows, tile)).astype(o_ref.dtype)

    @pl.when(t > n_stream)
    def _std_tail_step():
        # Later std-channel tiles only re-broadcast the cached (N, 1) value — no
        # repeated cross-lane reduce.
        o_ref[...] = jnp.broadcast_to(std_ref[...], (n_rows, tile)).astype(o_ref.dtype)


def batch_std(x: jax.Array, group_size: int = 4, *,
              max_tile_lanes: int = 8192) -> jax.Array:
    """ProGAN mini-batch-std layer.  x: [N, C, H, W] -> [N, C+1, H, W]."""
    N, C, H, W = x.shape
    G = group_size
    assert N % G == 0, "batch must be divisible by group_size"
    M = N // G
    HW = H * W
    F = C * HW                    # flattened per-sample feature size (lane axis)
    OUTF = (C + 1) * HW           # per-sample output size incl. the std channel

    # TODO(synk): shapes with C*H*W not a multiple of 128 would need an
    # unaligned fallback; standard ProGAN discriminator shapes satisfy this.
    assert F % 128 == 0, "C*H*W must be a multiple of 128"

    # Lane tile: largest multiple of 128 dividing F, capped.  Blocks are only
    # rows_pad*tile*4 bytes, so even tile=8192 is ~MiB-scale: prefer the biggest
    # tile to amortize the ~0.35us/step grid overhead on every generation.
    n128 = F // 128
    max_k = max(max_tile_lanes // 128, 1)
    tile_k = 1
    for d in range(1, min(n128, max_k) + 1):
        if n128 % d == 0:
            tile_k = d
    tile = 128 * tile_k

    n_stream = F // tile                    # tiles streaming x -> centered x
    n_std = pl.cdiv(HW, tile)               # tiles emitting the std channel
    n_total = n_stream + n_std

    # Kernel-facing layout: pure view, same memory order as the torch .view.
    x2 = x.reshape(N, F)

    kernel = functools.partial(
        _batch_std_kernel, group_size=G, stride=M, n_rows=N, feat=F,
        n_stream=n_stream, tile=tile)

    rows_pad = ((N + 7) // 8) * 8
    io_block = rows_pad * tile * x.dtype.itemsize
    scratch_bytes = rows_pad * 128 * 4 + rows_pad * 128 * 4   # acc + std (padded)
    need = 4 * io_block + scratch_bytes + (4 << 20)
    # Per-generation VMEM ceiling with headroom: never request all of physical
    # VMEM (v7x has only 64 MiB; leave room for compiler-internal scratch).
    try:
        vmem_cap = int(pltpu.get_tpu_info().vmem_capacity_bytes)
    except Exception:
        vmem_cap = 64 << 20
    ceiling = (vmem_cap * 3) // 4
    vmem_limit = int(min(max(need, 8 << 20), ceiling))

    cost = pl.CostEstimate(
        flops=int(N * F * (2 * max(1, math.ceil(math.log2(max(G, 2)))) + 4)),
        transcendentals=int(M * F),
        bytes_accessed=int(N * (F + OUTF) * x.dtype.itemsize),
    )

    out = pl.pallas_call(
        kernel,
        out_shape=jax.ShapeDtypeStruct((N, OUTF), x.dtype),
        grid_spec=pltpu.PrefetchScalarGridSpec(
            num_scalar_prefetch=0,
            grid=(n_total,),
            in_specs=[pl.BlockSpec(
                (N, tile),
                # Clamp on the trailing std-channel steps: same block index as
                # the previous step, so the pipeline skips the re-fetch.
                # (If profiling ever shows exposed input DMA at small tiles,
                #  sweep pipeline_mode=pl.Buffered(3) here.)
                lambda t: (0, jnp.minimum(t, n_stream - 1)))],
            out_specs=pl.BlockSpec((N, tile), lambda t: (0, t)),
            scratch_shapes=[pltpu.VMEM((N, 128), jnp.float32),   # acc: folded sqrt sums
                            pltpu.VMEM((N, 1), jnp.float32)],    # cached per-sample std
        ),
        compiler_params=pltpu.CompilerParams(
            dimension_semantics=("arbitrary",),   # axis carries the accumulator
            vmem_limit_bytes=vmem_limit,
        ),
        cost_estimate=cost,
    )(x2)

    # (N, (C+1)*H*W) -> (N, C+1, H, W): free view.
    return out.reshape(N, C + 1, H, W)


def _reference(x: jax.Array, group_size: int = 4) -> jax.Array:
    """Pure-JAX reference mirroring the torch code (incl. in-place centering)."""
    N, C, H, W = x.shape
    G = group_size
    M = N // G
    xg = x.reshape(G, M, C, H, W).astype(jnp.float32)
    mean_g = jnp.mean(xg, axis=0, keepdims=True)
    centered = xg - mean_g                                   # torch mutates x here
    std = jnp.sqrt(jnp.mean(centered ** 2, axis=0) + 1e-8)   # [M, C, H, W]
    std_m = jnp.mean(std.reshape(M, -1), axis=1)             # [M]
    std_chan = jnp.broadcast_to(
        std_m[None, :, None, None, None], (G, M, 1, H, W)).reshape(N, 1, H, W)
    return jnp.concatenate(
        [centered.reshape(N, C, H, W).astype(x.dtype), std_chan.astype(x.dtype)],
        axis=1)


if __name__ == "__main__":
    key = jax.random.PRNGKey(0)
    configs = [
        # (N, C, H, W, group_size, max_tile_lanes)
        (8, 4, 16, 16, 4, 8192),    # M=2: batch packed on sublanes, single stream tile
        (16, 4, 16, 16, 4, 8192),   # M=4, N=16: rows span more than one sublane tile
        (32, 4, 8, 8, 4, 8192),     # M=8: aligned slice-add var path; HW=64 clipped epilogue
        (8, 2, 32, 32, 4, 512),     # forced small tile: multi-step accumulator + cached std tail
    ]
    for i, (N, C, H, W, G, cap) in enumerate(configs):
        k = jax.random.fold_in(key, i)
        x = jax.random.normal(k, (N, C, H, W), dtype=jnp.float32)
        y = jax.block_until_ready(batch_std(x, group_size=G, max_tile_lanes=cap))
        y_ref = _reference(x, group_size=G)
        assert y.shape == (N, C + 1, H, W), y.shape
        assert jnp.allclose(y, y_ref, atol=1e-5, rtol=1e-5), f"mismatch at config {i}"
    print("KERNEL_OK")
</pallas_src>

<mosaic_0001>
module attributes {stable_mosaic.version = 11 : i64} {
  func.func @_batch_std_kernel(%arg0: i32, %arg1: memref<8x1024xf32, #tpu.memory_space<vmem>>, %arg2: memref<8x1024xf32, #tpu.memory_space<vmem>>, %arg3: memref<8x128xf32, #tpu.memory_space<vmem>>, %arg4: memref<8x1xf32, #tpu.memory_space<vmem>>) attributes {dimension_semantics = [#tpu.dimension_semantics<arbitrary>], iteration_bounds = array<i64: 2>, scalar_prefetch = 0 : i64, scratch_operands = 2 : i64, tpu.core_type = #tpu.core_type<tc>, window_params = [{transform_indices = @transform_0, window_bounds = array<i64: 8, 1024>}, {transform_indices = @transform_1, window_bounds = array<i64: 8, 1024>}]} {
    %c1_i32 = arith.constant 1 : i32
    %0 = arith.cmpi slt, %arg0, %c1_i32 : i32
    %1 = arith.extui %0 : i1 to i32
    %c0_i32 = arith.constant 0 : i32
    %2 = arith.cmpi ne, %1, %c0_i32 : i32
    scf.if %2 {
      %c0_i32_4 = arith.constant 0 : i32
      %9 = arith.cmpi eq, %arg0, %c0_i32_4 : i32
      %10 = arith.extui %9 : i1 to i32
      %c0_i32_5 = arith.constant 0 : i32
      %11 = arith.cmpi ne, %10, %c0_i32_5 : i32
      scf.if %11 {
        %cst_17 = arith.constant 0.000000e+00 : f32
        %50 = vector.broadcast %cst_17 : f32 to vector<8x128xf32>
        %c0_18 = arith.constant 0 : index
        %c0_19 = arith.constant 0 : index
        %51 = vector.load %arg3[%c0_18, %c0_19] : memref<8x128xf32, #tpu.memory_space<vmem>>, vector<8x128xf32>
        tpu.vector_store %arg3[%c0_18, %c0_19], %50 {strides = array<i32>} : memref<8x128xf32, #tpu.memory_space<vmem>>, vector<8x128xf32>,
      } else {
      }
      %c0 = arith.constant 0 : index
      %c0_6 = arith.constant 0 : index
      %12 = vector.load %arg1[%c0, %c0_6] : memref<8x1024xf32, #tpu.memory_space<vmem>>, vector<8x1024xf32>
      %c2_i32 = arith.constant 2 : i32
      %13 = tpu.dynamic_rotate %12 by %c2_i32 dim 0 : vector<8x1024xf32>, i32 -> vector<8x1024xf32>
      %14 = arith.addf %12, %13 : vector<8x1024xf32>
      %c4_i32 = arith.constant 4 : i32
      %15 = tpu.dynamic_rotate %14 by %c4_i32 dim 0 : vector<8x1024xf32>, i32 -> vector<8x1024xf32>
      %16 = arith.addf %14, %15 : vector<8x1024xf32>
      %cst = arith.constant 2.500000e-01 : f32
      %17 = vector.broadcast %cst : f32 to vector<8x1024xf32>
      %18 = arith.mulf %16, %17 : vector<8x1024xf32>
      %19 = arith.subf %12, %18 : vector<8x1024xf32>
      %c0_7 = arith.constant 0 : index
      %c0_8 = arith.constant 0 : index
      %20 = vector.load %arg2[%c0_7, %c0_8] : memref<8x1024xf32, #tpu.memory_space<vmem>>, vector<8x1024xf32>
      tpu.vector_store %arg2[%c0_7, %c0_8], %19 {strides = array<i32>} : memref<8x1024xf32, #tpu.memory_space<vmem>>, vector<8x1024xf32>,
      %21 = arith.mulf %19, %19 : vector<8x1024xf32>
      %c2_i32_9 = arith.constant 2 : i32
      %22 = tpu.dynamic_rotate %21 by %c2_i32_9 dim 0 : vector<8x1024xf32>, i32 -> vector<8x1024xf32>
      %23 = arith.addf %21, %22 : vector<8x1024xf32>
      %c4_i32_10 = arith.constant 4 : i32
      %24 = tpu.dynamic_rotate %23 by %c4_i32_10 dim 0 : vector<8x1024xf32>, i32 -> vector<8x1024xf32>
      %25 = arith.addf %23, %24 : vector<8x1024xf32>
      %26 = vector.extract_strided_slice %25 {offsets = [0, 0], sizes = [2, 1024], strides = [1, 1]} : vector<8x1024xf32> to vector<2x1024xf32>
      %cst_11 = arith.constant 2.500000e-01 : f32
      %27 = vector.broadcast %cst_11 : f32 to vector<2x1024xf32>
      %28 = arith.mulf %26, %27 : vector<2x1024xf32>
      %cst_12 = arith.constant 9.99999993E-9 : f32
      %29 = vector.broadcast %cst_12 : f32 to vector<2x1024xf32>
      %30 = arith.addf %28, %29 : vector<2x1024xf32>
      %31 = math.sqrt %30 : vector<2x1024xf32>
      %32 = vector.extract_strided_slice %31 {offsets = [0, 0], sizes = [2, 128], strides = [1, 1]} : vector<2x1024xf32> to vector<2x128xf32>
      %33 = vector.extract_strided_slice %31 {offsets = [0, 128], sizes = [2, 128], strides = [1, 1]} : vector<2x1024xf32> to vector<2x128xf32>
      %34 = vector.extract_strided_slice %31 {offsets = [0, 256], sizes = [2, 128], strides = [1, 1]} : vector<2x1024xf32> to vector<2x128xf32>
      %35 = vector.extract_strided_slice %31 {offsets = [0, 384], sizes = [2, 128], strides = [1, 1]} : vector<2x1024xf32> to vector<2x128xf32>
      %36 = vector.extract_strided_slice %31 {offsets = [0, 512], sizes = [2, 128], strides = [1, 1]} : vector<2x1024xf32> to vector<2x128xf32>
      %37 = vector.extract_strided_slice %31 {offsets = [0, 640], sizes = [2, 128], strides = [1, 1]} : vector<2x1024xf32> to vector<2x128xf32>
      %38 = vector.extract_strided_slice %31 {offsets = [0, 768], sizes = [2, 128], strides = [1, 1]} : vector<2x1024xf32> to vector<2x128xf32>
      %39 = vector.extract_strided_slice %31 {offsets = [0, 896], sizes = [2, 128], strides = [1, 1]} : vector<2x1024xf32> to vector<2x128xf32>
      %40 = arith.addf %32, %33 : vector<2x128xf32>
      %41 = arith.addf %34, %35 : vector<2x128xf32>
      %42 = arith.addf %36, %37 : vector<2x128xf32>
      %43 = arith.addf %38, %39 : vector<2x128xf32>
      %44 = arith.addf %40, %41 : vector<2x128xf32>
      %45 = arith.addf %42, %43 : vector<2x128xf32>
      %46 = arith.addf %44, %45 : vector<2x128xf32>
      %c0_13 = arith.constant 0 : index
      %c0_14 = arith.constant 0 : index
      %47 = vector.load %arg3[%c0_13, %c0_14] : memref<8x128xf32, #tpu.memory_space<vmem>>, vector<2x128xf32>
      %48 = arith.addf %47, %46 : vector<2x128xf32>
      %c0_15 = arith.constant 0 : index
      %c0_16 = arith.constant 0 : index
      %49 = vector.load %arg3[%c0_15, %c0_16] : memref<8x128xf32, #tpu.memory_space<vmem>>, vector<2x128xf32>
      tpu.vector_store %arg3[%c0_15, %c0_16], %48 {strides = array<i32>} : memref<8x128xf32, #tpu.memory_space<vmem>>, vector<2x128xf32>,
    } else {
    }
    %c1_i32_0 = arith.constant 1 : i32
    %3 = arith.cmpi eq, %arg0, %c1_i32_0 : i32
    %4 = arith.extui %3 : i1 to i32
    %c0_i32_1 = arith.constant 0 : i32
    %5 = arith.cmpi ne, %4, %c0_i32_1 : i32
    scf.if %5 {
      %c0 = arith.constant 0 : index
      %c0_4 = arith.constant 0 : index
      %9 = vector.load %arg3[%c0, %c0_4] : memref<8x128xf32, #tpu.memory_space<vmem>>, vector<8x128xf32>
      %c2_i32 = arith.constant 2 : i32
      %10 = tpu.dynamic_rotate %9 by %c2_i32 dim 0 : vector<8x128xf32>, i32 -> vector<8x128xf32>
      %11 = arith.addf %9, %10 : vector<8x128xf32>
      %c4_i32 = arith.constant 4 : i32
      %12 = tpu.dynamic_rotate %11 by %c4_i32 dim 0 : vector<8x128xf32>, i32 -> vector<8x128xf32>
      %13 = arith.addf %11, %12 : vector<8x128xf32>
      %cst = arith.constant dense<0.000000e+00> : vector<8xf32>
      %14 = vector.multi_reduction <add>, %13, %cst [1] : vector<8x128xf32> to vector<8xf32>
      %15 = vector.shape_cast %14 : vector<8xf32> to vector<8x1xf32>
      %cst_5 = arith.constant 9.765625E-4 : f32
      %16 = vector.broadcast %cst_5 : f32 to vector<8x1xf32>
      %17 = arith.mulf %15, %16 : vector<8x1xf32>
      %c0_6 = arith.constant 0 : index
      %c0_7 = arith.constant 0 : index
      %18 = vector.load %arg4[%c0_6, %c0_7] : memref<8x1xf32, #tpu.memory_space<vmem>>, vector<8x1xf32>
      tpu.vector_store %arg4[%c0_6, %c0_7], %17 {strides = array<i32>} : memref<8x1xf32, #tpu.memory_space<vmem>>, vector<8x1xf32>,
      %19 = vector.shape_cast %17 : vector<8x1xf32> to vector<8x1xf32>
      %20 = vector.broadcast %19 : vector<8x1xf32> to vector<8x1024xf32>
      %c0_8 = arith.constant 0 : index
      %c0_9 = arith.constant 0 : index
      %21 = vector.load %arg2[%c0_8, %c0_9] : memref<8x1024xf32, #tpu.memory_space<vmem>>, vector<8x1024xf32>
      tpu.vector_store %arg2[%c0_8, %c0_9], %20 {strides = array<i32>} : memref<8x1024xf32, #tpu.memory_space<vmem>>, vector<8x1024xf32>,
    } else {
    }
    %c1_i32_2 = arith.constant 1 : i32
    %6 = arith.cmpi sgt, %arg0, %c1_i32_2 : i32
    %7 = arith.extui %6 : i1 to i32
    %c0_i32_3 = arith.constant 0 : i32
    %8 = arith.cmpi ne, %7, %c0_i32_3 : i32
    scf.if %8 {
      %c0 = arith.constant 0 : index
      %c0_4 = arith.constant 0 : index
      %9 = vector.load %arg4[%c0, %c0_4] : memref<8x1xf32, #tpu.memory_space<vmem>>, vector<8x1xf32>
      %10 = vector.shape_cast %9 : vector<8x1xf32> to vector<8x1xf32>
      %11 = vector.broadcast %10 : vector<8x1xf32> to vector<8x1024xf32>
      %c0_5 = arith.constant 0 : index
      %c0_6 = arith.constant 0 : index
      %12 = vector.load %arg2[%c0_5, %c0_6] : memref<8x1024xf32, #tpu.memory_space<vmem>>, vector<8x1024xf32>
      tpu.vector_store %arg2[%c0_5, %c0_6], %11 {strides = array<i32>} : memref<8x1024xf32, #tpu.memory_space<vmem>>, vector<8x1024xf32>,
    } else {
    }
    return
  }
  func.func @transform_0(%arg0: i32) -> (i32, i32) {
    %c0_i32 = arith.constant 0 : i32
    %0 = arith.minsi %arg0, %c0_i32 : i32
    %c0_i32_0 = arith.constant 0 : i32
    %c0_i32_1 = arith.constant 0 : i32
    return %c0_i32_0, %0 : i32, i32
  }
  func.func @transform_1(%arg0: i32) -> (i32, i32) {
    %c0_i32 = arith.constant 0 : i32
    %c0_i32_0 = arith.constant 0 : i32
    return %c0_i32, %arg0 : i32, i32
  }
}

</mosaic_0001>

<llo_original>
// kernel: tpu_custom_call.1
$region0: #{tpu_custom_call.1}
  #allocation0 [shape = 'u32[]', space=smem, size = 0x4, offset = 0x4, fixed_abs, tag = 'smem constant byte address 0x4 - core index']
  #allocation1 [shape = 'u32[144,128]{1,0:T(1,128)}', space=vmem, size = 0x12000, scoped, tag = 'internal scratch']
  #allocation2 [shape = 'f32[8,128]{1,0:T(8,128)}', space=vmem, size = 0x1000, scoped, tag = 'scratch operand']
  #allocation3 [shape = 'f32[8,1]{1,0:T(8,128)}', space=vmem, size = 0x1000, scoped, tag = 'scratch operand']
  %s0 = inlined_call_operand.hbm [shape: f32[8,1024], index: 0, kind: input, shape index: {}]
  %s1 = inlined_call_operand.hbm [shape: f32[8,1280], index: 1, kind: output, shape index: {}]
  %s2 = sld [smem:[#allocation0]]
  $region57: #{tpu_custom_call.1} parent=0
    _
  %s4 = ssub.s32 1, %s2
  %s5 = scalar_select 0, %s4, %s2
  $region1: #{tpu_custom_call.1} parent=0
    #allocation4 [shape = 'u8[65536]{0}', space=vmem, size = 0x10000, scoped, tag = 'input window, operand 0']
    #allocation5 [shape = 's32[2]{0}', space=sflag, size = 0x8, scoped, tag = 'scoped memory for tpu_custom_call.1']
    #allocation6 [shape = 's32[2]{0}', space=sflag, size = 0x8, scoped, tag = 'scoped memory for tpu_custom_call.1']
    #allocation7 [shape = 'u8[65536]{0}', space=vmem, size = 0x10000, scoped, tag = 'output window, operand 0']
    %6 = vsyncpa [#allocation5], 0
    %s7 = scalar_lea.sflag [#allocation5], 1
    %8 = vsyncpa %s7, 0
    %9 = vsyncpa [#allocation6], 0
    %s10 = scalar_lea.sflag [#allocation6], 1
    %11 = vsyncpa %s10, 0
    loop: start=0, step=1, limit=4
    $region2: #{tpu_custom_call.1} parent=1 // loop_pre_header
      _
    $region3: #{tpu_custom_call.1} parent=1 // loop_header
      %s13 = sphi 0, %s17
      %p14 = scmp.ge.s32.totalorder %s13, 4
      %s27 = sphi 0, %s29
      %s30 = sphi 0, %s27
      %s31 = sphi 0, %s30
      %s47 = sphi 0, %s31
      %s53 = sphi 0, %s55
      %s56 = sphi 0, %s53
      %s57 = sphi 0, %s56
      %s73 = sphi 0, %s57
    $region4: #{tpu_custom_call.1} parent=1 // loop_header_branch
      %16 = sbr.rel (%p14) target = $region8
    $region5: #{tpu_custom_call.1} parent=1 // loop_body
      %s18 = ssub.s32 %s13, 1
      %s19 = ssub.s32 %s13, 2
      %s20 = sadd.s32 %s13, 1
      %p21 = scmp.lt.s32.totalorder %s13, 0
      %s22 = scalar_select %p21, %s13, 0
      %p23 = scmp.lt.s32.totalorder %s20, 0
      %s24 = scalar_select %p23, %s20, 0
      %s25 = ssub.s32 %s22, %s24
      %p26 = scmp.eq.s32.totalorder %s25, 0
      %s28 = sadd.s32 %s27, 1
      %s29 = scalar_select %p26, %s27, %s28
      %p32 = pneg %p26
      %p33 = scmp.eq.s32.totalorder %s13, 1
      %p34 = por %p32, %p33
      %p35 = scmp.ne.s32.totalorder %s27, %s30
      %p36 = scmp.eq.s32.totalorder %s13, 0
      %p37 = por %p35, %p36
      %p38 = scmp.ne.s32.totalorder %s27, %s30
      %p39 = scmp.eq.s32.totalorder %s18, 1
      %p40 = por %p38, %p39
      %p41 = scmp.ne.s32.totalorder %s30, %s31
      %p42 = scmp.eq.s32.totalorder %s18, 0
      %p43 = por %p41, %p42
      %p44 = scmp.ne.s32.totalorder %s30, %s31
      %p45 = scmp.eq.s32.totalorder %s19, 1
      %p46 = por %p44, %p45
      %p48 = scmp.ne.s32.totalorder %s31, %s47
      %p49 = scmp.eq.s32.totalorder %s19, 0
      %p50 = por %p48, %p49
      %s51 = ssub.s32 %s13, %s20
      %p52 = scmp.eq.s32.totalorder %s51, 0
      %s54 = sadd.s32 %s53, 1
      %s55 = scalar_select %p52, %s53, %s54
      %p58 = pneg %p52
      %p59 = scmp.eq.s32.totalorder %s13, 1
      %p60 = por %p58, %p59
      %p61 = scmp.ne.s32.totalorder %s53, %s56
      %p62 = scmp.eq.s32.totalorder %s13, 0
      %p63 = por %p61, %p62
      %p64 = scmp.ne.s32.totalorder %s53, %s56
      %p65 = scmp.eq.s32.totalorder %s18, 1
      %p66 = por %p64, %p65
      %p67 = scmp.ne.s32.totalorder %s56, %s57
      %p68 = scmp.eq.s32.totalorder %s18, 0
      %p69 = por %p67, %p68
      %p70 = scmp.ne.s32.totalorder %s56, %s57
      %p71 = scmp.eq.s32.totalorder %s19, 1
      %p72 = por %p70, %p71
      %p74 = scmp.ne.s32.totalorder %s57, %s73
      %p75 = scmp.eq.s32.totalorder %s19, 0
      %p76 = por %p74, %p75
      %p77 = scmp.le.s32.totalorder 1, %s13
      %p78 = scmp.lt.s32.totalorder %s13, 3
      %p79 = pnand %p77, %p78
      %p80 = pneg %p79
      // Predicated region
      $region9: #{tpu_custom_call.1} parent=5 // pred_check
        _
      $region10: #{tpu_custom_call.1} parent=5 // pred_check_branch
        %82 = sbr.rel (%p79) target = $region12
      $region11: #{tpu_custom_call.1} parent=5 // pred_region
        %s83 = ssub.s32 %s13, 1
      $region12: #{tpu_custom_call.1} parent=5 // pred_fallthru
        _
      %p84 = scmp.lt.s32.totalorder %s13, 2
      // Predicated region
      $region13: #{tpu_custom_call.1} parent=5 // pred_check
        %p85 = pneg %p84
      $region14: #{tpu_custom_call.1} parent=5 // pred_check_branch
        %87 = sbr.rel (%p85) target = $region16
      $region15: #{tpu_custom_call.1} parent=5 // pred_region
        // Predicated region
        $region17: #{tpu_custom_call.1} parent=15 // pred_check
          %p88 = pneg %p37
        $region18: #{tpu_custom_call.1} parent=15 // pred_check_branch
          %90 = sbr.rel (%p88) target = $region20
        $region19: #{tpu_custom_call.1} parent=15 // pred_region
          %s91 = sand.u32 %s27, 1
          %s92 = scalar_lea.sflag [#allocation5], %s91
          %s93 = sand.u32 %s27, 1
          %s94 = smul.addr %s93, 64
          %s95 = scalar_lea.vmem [#allocation4], %s94
          %p96 = scmp.lt.s32.totalorder %s13, 0
          %s97 = scalar_select %p96, %s13, 0
          %s98 = smul.u32 8, %s97
          %s100 = ssub.s32 1024, 1024
          %101 = vsyncadd %s92, %s100
          %s102 = smul.addr %s98, 128
          %s103 = scalar_lea.hbm %s0, %s102
          %s105 = sshll.u32 %s95, 4
          %s106 = int_to_ptr.vmem [resolvable:$true] %s105
          %108 = dma.hbm_to_vmem [thread:$0]  %s103, 1024, %s106, %s92
        $region20: #{tpu_custom_call.1} parent=15 // pred_fallthru
          _
      $region16: #{tpu_custom_call.1} parent=5 // pred_fallthru
        _
      %p109 = scmp.le.s32.totalorder 1, %s13
      %p110 = scmp.lt.s32.totalorder %s13, 3
      %p111 = pnand %p109, %p110
      %p112 = pneg %p111
      // Predicated region
      $region21: #{tpu_custom_call.1} parent=5 // pred_check
        _
      $region22: #{tpu_custom_call.1} parent=5 // pred_check_branch
        %114 = sbr.rel (%p111) target = $region24
      $region23: #{tpu_custom_call.1} parent=5 // pred_region
        %s115 = ssub.s32 %s13, 1
        %s116 = sand.u32 %s30, 1
        %s117 = scalar_lea.sflag [#allocation5], %s116
        %s118 = sand.u32 %s30, 1
        %s119 = smul.addr %s118, 64
        %s120 = scalar_lea.vmem [#allocation4], %s119
        // Predicated region
        $region25: #{tpu_custom_call.1} parent=23 // pred_check
          %p121 = pneg %p43
        $region26: #{tpu_custom_call.1} parent=23 // pred_check_branch
          %123 = sbr.rel (%p121) target = $region28
        $region27: #{tpu_custom_call.1} parent=23 // pred_region
          %124 = dma.done %s117, 1024
        $region28: #{tpu_custom_call.1} parent=23 // pred_fallthru
          _
        %s125 = sand.u32 %s30, 1
        %s126 = scalar_lea.sflag [#allocation5], %s125
        %s127 = sand.u32 %s30, 1
        %s128 = smul.addr %s127, 64
        %s129 = scalar_lea.vmem [#allocation4], %s128
        %p130 = pneg %p43
        %p131 = pneg %p40
        %p132 = pneg %p69
        %p133 = pneg %p66
        %s134 = sand.u32 %s56, 1
        %s135 = scalar_lea.sflag [#allocation6], %s134
        %s136 = sand.u32 %s56, 1
        %s137 = smul.addr %s136, 64
        %s138 = scalar_lea.vmem [#allocation7], %s137
        %p139 = scmp.lt.s32.totalorder %s18, 0
        %s140 = scalar_select %p139, %s18, 0
        %s141 = smul.u32 8, %s140
        %s142 = smul.u32 8, %s18
        %s143 = ssub.s32 10, %s142
        %p144 = scmp.lt.s32.totalorder %s143, 8
        %s145 = scalar_select %p144, %s143, 8
        %s146 = smul.u32 128, %s145
        %p147 = scmp.lt.s32.totalorder %s18, 1
        // Predicated region
        $region29: #{tpu_custom_call.1} parent=23 // pred_check
          %p148 = pneg %p147
        $region30: #{tpu_custom_call.1} parent=23 // pred_check_branch
          %150 = sbr.rel (%p148) target = $region32
        $region31: #{tpu_custom_call.1} parent=23 // pred_region
          %p151 = scmp.eq.s32.totalorder %s18, 0
          // Predicated region
          $region33: #{tpu_custom_call.1} parent=31 // pred_check
            %p152 = pneg %p151
          $region34: #{tpu_custom_call.1} parent=31 // pred_check_branch
            %154 = sbr.rel (%p152) target = $region36
          $region35: #{tpu_custom_call.1} parent=31 // pred_region
            %155 = vst [vmem:[#allocation2] sm:$0xff] 0.0
          $region36: #{tpu_custom_call.1} parent=31 // pred_fallthru
            _
          %v156 = vld [vmem:[%s120] sm:$0xff]
          %v157 = vld [vmem:[%s120 + $0x8] sm:$0xff]
          %v158 = vld [vmem:[%s120 + $0x10] sm:$0xff]
          %v159 = vld [vmem:[%s120 + $0x18] sm:$0xff]
          %v160 = vld [vmem:[%s120 + $0x20] sm:$0xff]
          %v161 = vld [vmem:[%s120 + $0x28] sm:$0xff]
          %v162 = vld [vmem:[%s120 + $0x30] sm:$0xff]
          %v163 = vld [vmem:[%s120 + $0x38] sm:$0xff]
          %v164 = vrot.slane %v156, 6
          %v165 = vrot.slane %v157, 6
          %v166 = vrot.slane %v158, 6
          %v167 = vrot.slane %v159, 6
          %v168 = vrot.slane %v160, 6
          %v169 = vrot.slane %v161, 6
          %v170 = vrot.slane %v162, 6
          %v171 = vrot.slane %v163, 6
          %v172 = vadd.f32 %v156, %v164
          %v173 = vadd.f32 %v157, %v165
          %v174 = vadd.f32 %v158, %v166
          %v175 = vadd.f32 %v159, %v167
          %v176 = vadd.f32 %v160, %v168
          %v177 = vadd.f32 %v161, %v169
          %v178 = vadd.f32 %v162, %v170
          %v179 = vadd.f32 %v163, %v171
          %v180 = vrot.slane %v172, 4
          %v181 = vrot.slane %v173, 4
          %v182 = vrot.slane %v174, 4
          %v183 = vrot.slane %v175, 4
          %v184 = vrot.slane %v176, 4
          %v185 = vrot.slane %v177, 4
          %v186 = vrot.slane %v178, 4
          %v187 = vrot.slane %v179, 4
          %v188 = vadd.f32 %v172, %v180
          %v189 = vadd.f32 %v173, %v181
          %v190 = vadd.f32 %v174, %v182
          %v191 = vadd.f32 %v175, %v183
          %v192 = vadd.f32 %v176, %v184
          %v193 = vadd.f32 %v177, %v185
          %v194 = vadd.f32 %v178, %v186
          %v195 = vadd.f32 %v179, %v187
          %v196 = vmul.f32 %v188, 0.25
          %v197 = vmul.f32 %v189, 0.25
          %v198 = vmul.f32 %v190, 0.25
          %v199 = vmul.f32 %v191, 0.25
          %v200 = vmul.f32 %v192, 0.25
          %v201 = vmul.f32 %v193, 0.25
          %v202 = vmul.f32 %v194, 0.25
          %v203 = vmul.f32 %v195, 0.25
          %v204 = vsub.f32 %v156, %v196
          %v205 = vsub.f32 %v157, %v197
          %v206 = vsub.f32 %v158, %v198
          %v207 = vsub.f32 %v159, %v199
          %v208 = vsub.f32 %v160, %v200
          %v209 = vsub.f32 %v161, %v201
          %v210 = vsub.f32 %v162, %v202
          %v211 = vsub.f32 %v163, %v203
          %212 = vst [vmem:[%s138] sm:$0xff] %v204
          %213 = vst [vmem:[%s138 + $0x8] sm:$0xff] %v205
          %214 = vst [vmem:[%s138 + $0x10] sm:$0xff] %v206
          %215 = vst [vmem:[%s138 + $0x18] sm:$0xff] %v207
          %216 = vst [vmem:[%s138 + $0x20] sm:$0xff] %v208
          %217 = vst [vmem:[%s138 + $0x28] sm:$0xff] %v209
          %218 = vst [vmem:[%s138 + $0x30] sm:$0xff] %v210
          %219 = vst [vmem:[%s138 + $0x38] sm:$0xff] %v211
          %v220 = vmul.f32 %v204, %v204
          %v221 = vmul.f32 %v205, %v205
          %v222 = vmul.f32 %v206, %v206
          %v223 = vmul.f32 %v207, %v207
          %v224 = vmul.f32 %v208, %v208
          %v225 = vmul.f32 %v209, %v209
          %v226 = vmul.f32 %v210, %v210
          %v227 = vmul.f32 %v211, %v211
          %v228 = vrot.slane %v220, 6
          %v229 = vrot.slane %v221, 6
          %v230 = vrot.slane %v222, 6
          %v231 = vrot.slane %v223, 6
          %v232 = vrot.slane %v224, 6
          %v233 = vrot.slane %v225, 6
          %v234 = vrot.slane %v226, 6
          %v235 = vrot.slane %v227, 6
          %v236 = vadd.f32 %v220, %v228
          %v237 = vadd.f32 %v221, %v229
          %v238 = vadd.f32 %v222, %v230
          %v239 = vadd.f32 %v223, %v231
          %v240 = vadd.f32 %v224, %v232
          %v241 = vadd.f32 %v225, %v233
          %v242 = vadd.f32 %v226, %v234
          %v243 = vadd.f32 %v227, %v235
          %v244 = vrot.slane %v236, 4
          %v245 = vrot.slane %v237, 4
          %v246 = vrot.slane %v238, 4
          %v247 = vrot.slane %v239, 4
          %v248 = vrot.slane %v240, 4
          %v249 = vrot.slane %v241, 4
          %v250 = vrot.slane %v242, 4
          %v251 = vrot.slane %v243, 4
          %v252 = vadd.f32 %v236, %v244
          %v253 = vadd.f32 %v237, %v245
          %v254 = vadd.f32 %v238, %v246
          %v255 = vadd.f32 %v239, %v247
          %v256 = vadd.f32 %v240, %v248
          %v257 = vadd.f32 %v241, %v249
          %v258 = vadd.f32 %v242, %v250
          %v259 = vadd.f32 %v243, %v251
          %v260 = vmul.f32 %v252, 0.25
          %v261 = vmul.f32 %v253, 0.25
          %v262 = vmul.f32 %v254, 0.25
          %v263 = vmul.f32 %v255, 0.25
          %v264 = vmul.f32 %v256, 0.25
          %v265 = vmul.f32 %v257, 0.25
          %v266 = vmul.f32 %v258, 0.25
          %v267 = vmul.f32 %v259, 0.25
          %v268 = vadd.f32 %v260, 1e-08
          %v269 = vadd.f32 %v261, 1e-08
          %v270 = vadd.f32 %v262, 1e-08
          %v271 = vadd.f32 %v263, 1e-08
          %v272 = vadd.f32 %v264, 1e-08
          %v273 = vadd.f32 %v265, 1e-08
          %v274 = vadd.f32 %v266, 1e-08
          %v275 = vadd.f32 %v267, 1e-08
          %v276 = vrsqrt.pop %v268
          %v277 = vmul.f32 %v268, %v276
          %vm278 = vcmp.eq.f32.partialorder %v268, inf
          %v279 = vsel %vm278, %v268, %v277
          %vm280 = vcmp.eq.f32.partialorder %v268, 0.0
          %v281 = vand.u32 %v268, 2147483648
          %v282 = vsel %vm280, %v281, %v279
          %v283 = vrsqrt.pop %v269
          %v284 = vmul.f32 %v269, %v283
          %vm285 = vcmp.eq.f32.partialorder %v269, inf
          %v286 = vsel %vm285, %v269, %v284
          %vm287 = vcmp.eq.f32.partialorder %v269, 0.0
          %v288 = vand.u32 %v269, 2147483648
          %v289 = vsel %vm287, %v288, %v286
          %v290 = vrsqrt.pop %v270
          %v291 = vmul.f32 %v270, %v290
          %vm292 = vcmp.eq.f32.partialorder %v270, inf
          %v293 = vsel %vm292, %v270, %v291
          %vm294 = vcmp.eq.f32.partialorder %v270, 0.0
          %v295 = vand.u32 %v270, 2147483648
          %v296 = vsel %vm294, %v295, %v293
          %v297 = vrsqrt.pop %v271
          %v298 = vmul.f32 %v271, %v297
          %vm299 = vcmp.eq.f32.partialorder %v271, inf
          %v300 = vsel %vm299, %v271, %v298
          %vm301 = vcmp.eq.f32.partialorder %v271, 0.0
          %v302 = vand.u32 %v271, 2147483648
          %v303 = vsel %vm301, %v302, %v300
          %v304 = vrsqrt.pop %v272
          %v305 = vmul.f32 %v272, %v304
          %vm306 = vcmp.eq.f32.partialorder %v272, inf
          %v307 = vsel %vm306, %v272, %v305
          %vm308 = vcmp.eq.f32.partialorder %v272, 0.0
          %v309 = vand.u32 %v272, 2147483648
          %v310 = vsel %vm308, %v309, %v307
          %v311 = vrsqrt.pop %v273
          %v312 = vmul.f32 %v273, %v311
          %vm313 = vcmp.eq.f32.partialorder %v273, inf
          %v314 = vsel %vm313, %v273, %v312
          %vm315 = vcmp.eq.f32.partialorder %v273, 0.0
          %v316 = vand.u32 %v273, 2147483648
          %v317 = vsel %vm315, %v316, %v314
          %v318 = vrsqrt.pop %v274
          %v319 = vmul.f32 %v274, %v318
          %vm320 = vcmp.eq.f32.partialorder %v274, inf
          %v321 = vsel %vm320, %v274, %v319
          %vm322 = vcmp.eq.f32.partialorder %v274, 0.0
          %v323 = vand.u32 %v274, 2147483648
          %v324 = vsel %vm322, %v323, %v321
          %v325 = vrsqrt.pop %v275
          %v326 = vmul.f32 %v275, %v325
          %vm327 = vcmp.eq.f32.partialorder %v275, inf
          %v328 = vsel %vm327, %v275, %v326
          %vm329 = vcmp.eq.f32.partialorder %v275, 0.0
          %v330 = vand.u32 %v275, 2147483648
          %v331 = vsel %vm329, %v330, %v328
          %v332 = vadd.f32 %v282, %v289
          %v333 = vadd.f32 %v296, %v303
          %v334 = vadd.f32 %v310, %v317
          %v335 = vadd.f32 %v324, %v331
          %v336 = vadd.f32 %v332, %v333
          %v337 = vadd.f32 %v334, %v335
          %v338 = vadd.f32 %v336, %v337
          %v339 = vld [vmem:[#allocation2] sm:$0x3]
          %v340 = vadd.f32 %v339, %v338
          %341 = vst [vmem:[#allocation2] sm:$0x3] %v340
        $region32: #{tpu_custom_call.1} parent=23 // pred_fallthru
          _
        %p342 = scmp.eq.s32.totalorder %s18, 1
        // Predicated region
        $region37: #{tpu_custom_call.1} parent=23 // pred_check
          %p343 = pneg %p342
        $region38: #{tpu_custom_call.1} parent=23 // pred_check_branch
          %345 = sbr.rel (%p343) target = $region40
        $region39: #{tpu_custom_call.1} parent=23 // pred_region
          %v346 = vld [vmem:[#allocation2] sm:$0xff]
          %v347 = vrot.slane %v346, 6
          %v348 = vadd.f32 %v346, %v347
          %v349 = vrot.slane %v348, 4
          %v350 = vadd.f32 %v348, %v349
          %351 = vadd.xlane.f32.xlu0 %v350
          %v352 = vpop.xlane.xlu0 %351
          %v353 = vmul.f32 %v352, 0.0009765625
          %vm354 = vcmask 7168
          %355 = vst.msk [vmem:[#allocation3] sm:$0xff] %vm354, %v353
          %356 = vst [vmem:[%s138] sm:$0xff] %v353
          %357 = vst [vmem:[%s138 + $0x8] sm:$0xff] %v353
          %358 = vst [vmem:[%s138 + $0x10] sm:$0xff] %v353
          %359 = vst [vmem:[%s138 + $0x18] sm:$0xff] %v353
          %360 = vst [vmem:[%s138 + $0x20] sm:$0xff] %v353
          %361 = vst [vmem:[%s138 + $0x28] sm:$0xff] %v353
          %362 = vst [vmem:[%s138 + $0x30] sm:$0xff] %v353
          %363 = vst [vmem:[%s138 + $0x38] sm:$0xff] %v353
        $region40: #{tpu_custom_call.1} parent=23 // pred_fallthru
          _
        %p364 = scmp.gt.s32.totalorder %s18, 1
        // Predicated region
        $region41: #{tpu_custom_call.1} parent=23 // pred_check
          %p365 = pneg %p364
        $region42: #{tpu_custom_call.1} parent=23 // pred_check_branch
          %367 = sbr.rel (%p365) target = $region44
        $region43: #{tpu_custom_call.1} parent=23 // pred_region
          %v368 = vld [vmem:[#allocation3] sm:$0xff]
          %370 = vset.pattern.permute.xlu0 0
          %371 = vperm.xlu0 %370, %v368
          %v372 = vpop.permute.xlu0 %371
          %374 = vst [vmem:[%s138] sm:$0xff] %v372
          %375 = vst [vmem:[%s138 + $0x8] sm:$0xff] %v372
          %376 = vst [vmem:[%s138 + $0x10] sm:$0xff] %v372
          %377 = vst [vmem:[%s138 + $0x18] sm:$0xff] %v372
          %378 = vst [vmem:[%s138 + $0x20] sm:$0xff] %v372
          %379 = vst [vmem:[%s138 + $0x28] sm:$0xff] %v372
          %380 = vst [vmem:[%s138 + $0x30] sm:$0xff] %v372
          %381 = vst [vmem:[%s138 + $0x38] sm:$0xff] %v372
        $region44: #{tpu_custom_call.1} parent=23 // pred_fallthru
          _
        %s382 = sand.u32 %s56, 1
        %s383 = scalar_lea.sflag [#allocation6], %s382
        %s384 = sand.u32 %s56, 1
        %s385 = smul.addr %s384, 64
        %s386 = scalar_lea.vmem [#allocation7], %s385
        // Predicated region
        $region45: #{tpu_custom_call.1} parent=23 // pred_check
          %p387 = pneg %p66
        $region46: #{tpu_custom_call.1} parent=23 // pred_check_branch
          %389 = sbr.rel (%p387) target = $region48
        $region47: #{tpu_custom_call.1} parent=23 // pred_region
          %s390 = smul.u32 8, %s18
          %s391 = ssub.s32 10, %s390
          %p392 = scmp.lt.s32.totalorder %s391, 8
          %s393 = scalar_select %p392, %s391, 8
          %s394 = smul.u32 128, %s393
          %s396 = ssub.s32 1024, %s394
          %397 = vsyncadd %s383, %s396
          %p398 = scmp.ne.s32.totalorder 0, %s394
          %s399 = smul.addr %s390, 128
          %s400 = scalar_lea.hbm %s1, %s399
          %s401 = smul.u32 %s393, 8
          %s402 = sshll.u32 %s401, 4
          %s403 = sshll.u32 %s386, 4
          %s404 = int_to_ptr.vmem [resolvable:$true] %s403
          %406 = dma.vmem_to_hbm [thread:$0]  (%p398), %s404, %s402, %s400, %s383
        $region48: #{tpu_custom_call.1} parent=23 // pred_fallthru
          _
      $region24: #{tpu_custom_call.1} parent=5 // pred_fallthru
        _
      %p407 = scmp.le.s32.totalorder 2, %s13
      // Predicated region
      $region49: #{tpu_custom_call.1} parent=5 // pred_check
        %p408 = pneg %p407
      $region50: #{tpu_custom_call.1} parent=5 // pred_check_branch
        %410 = sbr.rel (%p408) target = $region52
      $region51: #{tpu_custom_call.1} parent=5 // pred_region
        %s411 = ssub.s32 %s13, 2
        // Predicated region
        $region53: #{tpu_custom_call.1} parent=51 // pred_check
          %p412 = pneg %p72
        $region54: #{tpu_custom_call.1} parent=51 // pred_check_branch
          %414 = sbr.rel (%p412) target = $region56
        $region55: #{tpu_custom_call.1} parent=51 // pred_region
          %s415 = sand.u32 %s57, 1
          %s416 = scalar_lea.sflag [#allocation6], %s415
          %s417 = sand.u32 %s57, 1
          %s418 = smul.addr %s417, 64
          %s419 = scalar_lea.vmem [#allocation7], %s418
          %420 = dma.done %s416, 1024
        $region56: #{tpu_custom_call.1} parent=51 // pred_fallthru
          _
      $region52: #{tpu_custom_call.1} parent=5 // pred_fallthru
        _
    $region6: #{tpu_custom_call.1} parent=1 // loop_footer
      %s17 = sadd.s32 1, %s13
    $region7: #{tpu_custom_call.1} parent=1 // loop_footer_branch
      %12 = sbr.rel target = $region3
    $region8: #{tpu_custom_call.1} parent=1 // loop_exit
      _
    %421 = vsyncpa [#allocation5], 1
    %s422 = scalar_lea.sflag [#allocation5], 1
    %423 = vsyncpa %s422, 1
    %424 = vsyncpa [#allocation6], 1
    %s425 = scalar_lea.sflag [#allocation6], 1
    %426 = vsyncpa %s425, 1

</llo_original>
